<compile_context>
chip_gen: v6e
topology: v6e:2x2x1
jax: 0.10.0
libtpu: 0.0.40
codegen_flags: <defaults>
</compile_context>

<pallas_src>
import math
from functools import partial

import jax
import jax.numpy as jnp
from jax.experimental import pallas as pl
from jax.experimental.pallas import tpu as pltpu


def _round_up(x, m):
    return (x + m - 1) // m * m


def _pick_tile_m(n):
    """Rows per grid step (static, decided at trace time)."""
    if n < 128:
        # bf16 packs two rows per sublane; 16-row blocks fill the packed vregs.
        return _round_up(max(n, 1), 16)
    n128 = _round_up(n, 128)
    # Cap at 512 to amortize per-step overhead, but keep >=2 grid steps so
    # v7x's 2 TensorCores can both be used via dimension_semantics=("parallel",).
    return min(512, _round_up(pl.cdiv(n128, 2), 128))


# ----------------------------- Pallas kernel --------------------------------
def _box_output_fused_kernel(x_ref, w_ref, b_ref, out_ref):
    # x_ref: (TILE_M, D) f32   — cast to bf16 in-register (VPU; no wrapper pass)
    # w_ref: (D, OUT_PAD) bf16 — fused [cls | reg] weight, VMEM-resident
    # b_ref: (1, OUT_PAD) f32  — fused bias
    # out_ref: (TILE_M, OUT_PAD) f32 — lane-dense (OUT_PAD % 128 == 0)
    acc = jnp.dot(x_ref[...].astype(jnp.bfloat16), w_ref[...],
                  preferred_element_type=jnp.float32)
    out_ref[...] = acc + b_ref[...]


# ---------------------- one-time parameter preparation ----------------------
def prepare_box_output_params(w_cls_t, b_cls, w_reg_t, b_reg):
    """Fuse the two heads along the output axis, pad to a 128-lane multiple,
    and cast the weight to bf16.  Call ONCE; reuse the result every forward."""
    c = w_cls_t.shape[1]
    r = w_reg_t.shape[1]
    out = c + r
    out_pad = _round_up(out, 128)                        # lane-dense output width

    w = jnp.concatenate([w_cls_t, w_reg_t], axis=1)      # (D, C+R)
    b = jnp.concatenate([b_cls, b_reg], axis=1)          # (1, C+R)
    if out_pad != out:
        w = jnp.pad(w, ((0, 0), (0, out_pad - out)))
        b = jnp.pad(b, ((0, 0), (0, out_pad - out)))

    w_bf16 = w.astype(jnp.bfloat16)                      # halves weight HBM bytes
    b_f32 = b.astype(jnp.float32)
    return w_bf16, b_f32, c, r


# --------------------------------- forward ----------------------------------
@partial(jax.jit, static_argnames=("num_cls", "num_reg"))
def box_output_forward(x, w_fused_bf16, b_fused_f32, *, num_cls, num_reg):
    """x: (N, C, H, W) or (N, D). Returns (cls_score, bbox_pred) in f32."""
    if x.ndim > 2:
        x = x.reshape(x.shape[0], -1)                    # torch.flatten(x, 1)
    n, d = x.shape
    out = num_cls + num_reg
    out_pad = w_fused_bf16.shape[1]

    tile_m = _pick_tile_m(n)
    n_pad = _round_up(n, tile_m)
    if n_pad != n:
        x = jnp.pad(x, ((0, n_pad - n), (0, 0)))

    fused = pl.pallas_call(
        _box_output_fused_kernel,
        out_shape=jax.ShapeDtypeStruct((n_pad, out_pad), jnp.float32),
        grid=(n_pad // tile_m,),
        in_specs=[
            pl.BlockSpec((tile_m, d), lambda i: (i, 0)),    # x tile, pipelined over M
            pl.BlockSpec((d, out_pad), lambda i: (0, 0)),   # fused weight, VMEM-resident
            pl.BlockSpec((1, out_pad), lambda i: (0, 0)),   # fused bias, VMEM-resident
        ],
        out_specs=pl.BlockSpec((tile_m, out_pad), lambda i: (i, 0)),
        compiler_params=pltpu.CompilerParams(
            dimension_semantics=("parallel",),              # M tiles across v7x's 2 TCs
        ),
    )(x, w_fused_bf16, b_fused_f32)

    # The slices live inside this jit, so XLA can fuse them into consumers
    # instead of re-materializing the fused output from HBM.
    cls_score = fused[:n, :num_cls]
    bbox_pred = fused[:n, num_cls:out]
    return cls_score, bbox_pred


# ------------------------- deterministic param init --------------------------
def init_box_output_params(key, dim_in, num_classes, prior_prob=0.01,
                           cls_agnostic_bbox_reg=False):
    """Mirrors Box_output.__init__ (cross_entropy loss, cls_on, reg_on)."""
    k_cls, k_reg = jax.random.split(key)
    # nn.Linear weight is (out, in); store transposed (in, out) for the kernel.
    w_cls = 0.01 * jax.random.normal(k_cls, (num_classes, dim_in), jnp.float32)
    if prior_prob == 0.0:
        bias_value = 0.0
    else:
        bias_value = -math.log((1.0 - prior_prob) / prior_prob)
    b_cls = jnp.full((1, num_classes), bias_value, jnp.float32)

    reg_out = 4 * 2 if cls_agnostic_bbox_reg else 4 * num_classes
    w_reg = 0.001 * jax.random.normal(k_reg, (reg_out, dim_in), jnp.float32)
    b_reg = jnp.zeros((1, reg_out), jnp.float32)

    return w_cls.T, b_cls, w_reg.T, b_reg


# ---------------------------------- main -------------------------------------
if __name__ == "__main__":
    key = jax.random.PRNGKey(0)
    k_x, k_p = jax.random.split(key)

    # Small ROI-feature-like input: 8 ROIs, 4 channels, 8x8 spatial (NCHW).
    N, C, H, W = 8, 4, 8, 8
    dim_in = C * H * W                      # 256
    num_classes = 16                        # cfg.MODEL.NUM_CLASSES (synthetic)

    x = jax.random.normal(k_x, (N, C, H, W), jnp.float32)
    w_cls_t, b_cls, w_reg_t, b_reg = init_box_output_params(
        k_p, dim_in, num_classes, prior_prob=0.01, cls_agnostic_bbox_reg=False)

    # One-time fusion/pad/cast (hoisted out of the per-call path).
    w_fused, b_fused, c, r = prepare_box_output_params(w_cls_t, b_cls, w_reg_t, b_reg)
    jax.block_until_ready((w_fused, b_fused))

    cls_score, bbox_pred = box_output_forward(
        x, w_fused, b_fused, num_cls=c, num_reg=r)
    jax.block_until_ready((cls_score, bbox_pred))

    # Apples-to-apples reference: bf16 weights, bf16-cast x, f32 accumulation.
    x_flat = x.reshape(N, -1)
    xb = x_flat.astype(jnp.bfloat16).astype(jnp.float32)
    wcb = w_cls_t.astype(jnp.bfloat16).astype(jnp.float32)
    wrb = w_reg_t.astype(jnp.bfloat16).astype(jnp.float32)
    ref_cls = xb @ wcb + b_cls
    ref_reg = xb @ wrb + b_reg

    assert cls_score.shape == (N, num_classes)
    assert bbox_pred.shape == (N, 4 * num_classes)
    assert jnp.allclose(cls_score, ref_cls, atol=1e-3, rtol=1e-3)
    assert jnp.allclose(bbox_pred, ref_reg, atol=1e-3, rtol=1e-3)

    print("KERNEL_OK")
</pallas_src>

<mosaic_0001>
module attributes {stable_mosaic.version = 11 : i64} {
  func.func @_box_output_fused_kernel(%arg0: i32, %arg1: memref<16x256xf32, #tpu.memory_space<vmem>>, %arg2: memref<256x128xbf16, #tpu.memory_space<vmem>>, %arg3: memref<1x128xf32, #tpu.memory_space<vmem>>, %arg4: memref<16x128xf32, #tpu.memory_space<vmem>>) attributes {dimension_semantics = [#tpu.dimension_semantics<parallel>], iteration_bounds = array<i64: 1>, scalar_prefetch = 0 : i64, scratch_operands = 0 : i64, tpu.core_type = #tpu.core_type<tc>, window_params = [{transform_indices = @transform_0, window_bounds = array<i64: 16, 256>}, {pipeline_mode = #tpu.pipeline_mode<synchronous>, transform_indices = @transform_1, window_bounds = array<i64: 256, 128>}, {pipeline_mode = #tpu.pipeline_mode<synchronous>, transform_indices = @transform_2, window_bounds = array<i64: 1, 128>}, {transform_indices = @transform_3, window_bounds = array<i64: 16, 128>}]} {
    %c0 = arith.constant 0 : index
    %c0_0 = arith.constant 0 : index
    %0 = vector.load %arg1[%c0, %c0_0] : memref<16x256xf32, #tpu.memory_space<vmem>>, vector<16x256xf32>
    %1 = arith.truncf %0 : vector<16x256xf32> to vector<16x256xbf16>
    %c0_1 = arith.constant 0 : index
    %c0_2 = arith.constant 0 : index
    %2 = vector.load %arg2[%c0_1, %c0_2] : memref<256x128xbf16, #tpu.memory_space<vmem>>, vector<256x128xbf16>
    %cst = arith.constant dense<0.000000e+00> : vector<16x128xf32>
    %3 = tpu.matmul %1, %2, %cst {dimension_numbers = #tpu.dot_dimension_numbers<[1], [0], [0], [1], [0, 0, 1, 1], [], []>} : vector<16x256xbf16>, vector<256x128xbf16>, vector<16x128xf32> -> vector<16x128xf32>
    %c0_3 = arith.constant 0 : index
    %c0_4 = arith.constant 0 : index
    %4 = vector.load %arg3[%c0_3, %c0_4] : memref<1x128xf32, #tpu.memory_space<vmem>>, vector<1x128xf32>
    %5 = vector.broadcast %4 : vector<1x128xf32> to vector<16x128xf32>
    %6 = arith.addf %3, %5 : vector<16x128xf32>
    %c0_5 = arith.constant 0 : index
    %c0_6 = arith.constant 0 : index
    %7 = vector.load %arg4[%c0_5, %c0_6] : memref<16x128xf32, #tpu.memory_space<vmem>>, vector<16x128xf32>
    tpu.vector_store %arg4[%c0_5, %c0_6], %6 {strides = array<i32>} : memref<16x128xf32, #tpu.memory_space<vmem>>, vector<16x128xf32>,
    return
  }
  func.func @transform_0(%arg0: i32) -> (i32, i32) {
    %c0_i32 = arith.constant 0 : i32
    %c0_i32_0 = arith.constant 0 : i32
    return %arg0, %c0_i32 : i32, i32
  }
  func.func @transform_1(%arg0: i32) -> (i32, i32) {
    %c0_i32 = arith.constant 0 : i32
    %c0_i32_0 = arith.constant 0 : i32
    %c0_i32_1 = arith.constant 0 : i32
    return %c0_i32, %c0_i32_0 : i32, i32
  }
  func.func @transform_2(%arg0: i32) -> (i32, i32) {
    %c0_i32 = arith.constant 0 : i32
    %c0_i32_0 = arith.constant 0 : i32
    %c0_i32_1 = arith.constant 0 : i32
    return %c0_i32, %c0_i32_0 : i32, i32
  }
  func.func @transform_3(%arg0: i32) -> (i32, i32) {
    %c0_i32 = arith.constant 0 : i32
    %c0_i32_0 = arith.constant 0 : i32
    return %arg0, %c0_i32 : i32, i32
  }
}

</mosaic_0001>

<llo_original>
// kernel: box_output_forward.1
$region0: #{box_output_forward.1}
  #allocation0 [shape = 'u32[]', space=smem, size = 0x4, offset = 0x4, fixed_abs, tag = 'smem constant byte address 0x4 - core index']
  #allocation1 [shape = 'u32[144,128]{1,0:T(1,128)}', space=vmem, size = 0x12000, scoped, tag = 'internal scratch']
  %s0 = inlined_call_operand.vmem [shape: f32[16,256], index: 0, kind: input, shape index: {}]
  %s1 = inlined_call_operand.vmem [shape: bf16[256,128], index: 1, kind: input, shape index: {}]
  %s2 = inlined_call_operand.vmem [shape: f32[1,128], index: 2, kind: input, shape index: {}]
  %s3 = inlined_call_operand.vmem [shape: f32[16,128], index: 3, kind: output, shape index: {}]
  %s4 = sld [smem:[#allocation0]]
  $region22: #{box_output_forward.1} parent=0
    _
  %s6 = ssub.s32 1, %s4
  %s7 = scalar_select 0, %s6, %s4
  // Predicated region
  $region2: #{box_output_forward.1} parent=0 // pred_check
    _
  $region3: #{box_output_forward.1} parent=0 // pred_check_branch
    %9 = sbr.rel (0) target = $region5
  $region4: #{box_output_forward.1} parent=0 // pred_region
    _
  $region5: #{box_output_forward.1} parent=0 // pred_fallthru
    _
  // Predicated region
  $region6: #{box_output_forward.1} parent=0 // pred_check
    _
  $region7: #{box_output_forward.1} parent=0 // pred_check_branch
    %11 = sbr.rel (0) target = $region9
  $region8: #{box_output_forward.1} parent=0 // pred_region
    _
  $region9: #{box_output_forward.1} parent=0 // pred_fallthru
    _
  // Predicated region
  $region10: #{box_output_forward.1} parent=0 // pred_check
    _
  $region11: #{box_output_forward.1} parent=0 // pred_check_branch
    %13 = sbr.rel (0) target = $region13
  $region12: #{box_output_forward.1} parent=0 // pred_region
    _
  $region13: #{box_output_forward.1} parent=0 // pred_fallthru
    _
  %v15 = vld [vmem:[%s0] sm:$0xff]
  %v16 = vld [vmem:[%s0 + $0x8] sm:$0xff]
  %v17 = vld [vmem:[%s0 + $0x10] sm:$0xff]
  %v18 = vld [vmem:[%s0 + $0x18] sm:$0xff]
  %v19 = vpack.c.bf16 %v17, %v15
  %v20 = vpack.c.bf16 %v18, %v16
  %v21 = vld [vmem:[%s1] sm:$0xf]
  %v22 = vld [vmem:[%s1 + $0x4] sm:$0xf]
  %v23 = vld [vmem:[%s1 + $0x8] sm:$0xf]
  %v24 = vld [vmem:[%s1 + $0xc] sm:$0xf]
  %v25 = vld [vmem:[%s1 + $0x10] sm:$0xf]
  %v26 = vld [vmem:[%s1 + $0x14] sm:$0xf]
  %v27 = vld [vmem:[%s1 + $0x18] sm:$0xf]
  %v28 = vld [vmem:[%s1 + $0x1c] sm:$0xf]
  %v29 = vld [vmem:[%s1 + $0x20] sm:$0xf]
  %v30 = vld [vmem:[%s1 + $0x24] sm:$0xf]
  %v31 = vld [vmem:[%s1 + $0x28] sm:$0xf]
  %v32 = vld [vmem:[%s1 + $0x2c] sm:$0xf]
  %v33 = vld [vmem:[%s1 + $0x30] sm:$0xf]
  %v34 = vld [vmem:[%s1 + $0x34] sm:$0xf]
  %v35 = vld [vmem:[%s1 + $0x38] sm:$0xf]
  %v36 = vld [vmem:[%s1 + $0x3c] sm:$0xf]
  %v37 = vld [vmem:[%s1 + $0x40] sm:$0xf]
  %v38 = vld [vmem:[%s1 + $0x44] sm:$0xf]
  %v39 = vld [vmem:[%s1 + $0x48] sm:$0xf]
  %v40 = vld [vmem:[%s1 + $0x4c] sm:$0xf]
  %v41 = vld [vmem:[%s1 + $0x50] sm:$0xf]
  %v42 = vld [vmem:[%s1 + $0x54] sm:$0xf]
  %v43 = vld [vmem:[%s1 + $0x58] sm:$0xf]
  %v44 = vld [vmem:[%s1 + $0x5c] sm:$0xf]
  %v45 = vld [vmem:[%s1 + $0x60] sm:$0xf]
  %v46 = vld [vmem:[%s1 + $0x64] sm:$0xf]
  %v47 = vld [vmem:[%s1 + $0x68] sm:$0xf]
  %v48 = vld [vmem:[%s1 + $0x6c] sm:$0xf]
  %v49 = vld [vmem:[%s1 + $0x70] sm:$0xf]
  %v50 = vld [vmem:[%s1 + $0x74] sm:$0xf]
  %v51 = vld [vmem:[%s1 + $0x78] sm:$0xf]
  %v52 = vld [vmem:[%s1 + $0x7c] sm:$0xf]
  %v53 = vld [vmem:[%s2] sm:$0x1]
  %v55 = vlaneseq
  %v56 = vshrl.u32 %v55, 7
  %v57 = vsub.s32 0, %v56
  %v58 = vrot.slane %v53, %v57
  %v92 = vunpack.c.l.b16 %v21
  %v93 = vunpack.c.l.b16 %v22
  %v94 = vunpack.c.l.b16 %v23
  %v95 = vunpack.c.l.b16 %v24
  %v96 = vunpack.c.l.b16 %v25
  %v97 = vunpack.c.l.b16 %v26
  %v98 = vunpack.c.l.b16 %v27
  %v99 = vunpack.c.l.b16 %v28
  %v100 = vunpack.c.l.b16 %v29
  %v101 = vunpack.c.l.b16 %v30
  %v102 = vunpack.c.l.b16 %v31
  %v103 = vunpack.c.l.b16 %v32
  %v104 = vunpack.c.l.b16 %v33
  %v105 = vunpack.c.l.b16 %v34
  %v106 = vunpack.c.l.b16 %v35
  %v107 = vunpack.c.l.b16 %v36
  %v108 = vunpack.c.l.b16 %v37
  %v109 = vunpack.c.l.b16 %v38
  %v110 = vunpack.c.l.b16 %v39
  %v111 = vunpack.c.l.b16 %v40
  %v112 = vunpack.c.l.b16 %v41
  %v113 = vunpack.c.l.b16 %v42
  %v114 = vunpack.c.l.b16 %v43
  %v115 = vunpack.c.l.b16 %v44
  %v116 = vunpack.c.l.b16 %v45
  %v117 = vunpack.c.l.b16 %v46
  %v118 = vunpack.c.l.b16 %v47
  %v119 = vunpack.c.l.b16 %v48
  %v120 = vunpack.c.l.b16 %v49
  %v121 = vunpack.c.l.b16 %v50
  %v122 = vunpack.c.l.b16 %v51
  %v123 = vunpack.c.l.b16 %v52
  %v124 = vpack.c.b16 %v93, %v92
  %v125 = vpack.c.b16 %v95, %v94
  %v126 = vpack.c.b16 %v97, %v96
  %v127 = vpack.c.b16 %v99, %v98
  %v128 = vpack.c.b16 %v101, %v100
  %v129 = vpack.c.b16 %v103, %v102
  %v130 = vpack.c.b16 %v105, %v104
  %v131 = vpack.c.b16 %v107, %v106
  %v132 = vpack.c.b16 %v109, %v108
  %v133 = vpack.c.b16 %v111, %v110
  %v134 = vpack.c.b16 %v113, %v112
  %v135 = vpack.c.b16 %v115, %v114
  %v136 = vpack.c.b16 %v117, %v116
  %v137 = vpack.c.b16 %v119, %v118
  %v138 = vpack.c.b16 %v121, %v120
  %v139 = vpack.c.b16 %v123, %v122
  %156 = vmatprep.subr.bf16.mxu0 0
  %157 = vmatpush1.bf16.msra.mxu0 %v131
  %158 = vmatprep.subr.bf16.mxu0 0
  %159 = vmatpush1.bf16.msra.mxu0 %v130
  %160 = vmatprep.subr.bf16.mxu0 0
  %161 = vmatpush1.bf16.msra.mxu0 %v129
  %162 = vmatprep.subr.bf16.mxu0 0
  %163 = vmatpush1.bf16.msra.mxu0 %v128
  %164 = vmatprep.subr.bf16.mxu0 0
  %165 = vmatpush1.bf16.msra.mxu0 %v127
  %166 = vmatprep.subr.bf16.mxu0 0
  %167 = vmatpush1.bf16.msra.mxu0 %v126
  %168 = vmatprep.subr.bf16.mxu0 0
  %169 = vmatpush1.bf16.msra.mxu0 %v125
  %170 = vmatprep.subr.bf16.mxu0 0
  %171 = vmatpush1.bf16.msra.mxu0 %v124
  %172 = vmatprep.subr.bf16.mxu0 0
  %173 = vmatpush2.bf16.msra.mxu0 %v139
  %174 = vmatprep.subr.bf16.mxu0 0
  %175 = vmatpush2.bf16.msra.mxu0 %v138
  %176 = vmatprep.subr.bf16.mxu0 0
  %177 = vmatpush2.bf16.msra.mxu0 %v137
  %178 = vmatprep.subr.bf16.mxu0 0
  %179 = vmatpush2.bf16.msra.mxu0 %v136
  %180 = vmatprep.subr.bf16.mxu0 0
  %181 = vmatpush2.bf16.msra.mxu0 %v135
  %182 = vmatprep.subr.bf16.mxu0 0
  %183 = vmatpush2.bf16.msra.mxu0 %v134
  %184 = vmatprep.subr.bf16.mxu0 0
  %185 = vmatpush2.bf16.msra.mxu0 %v133
  %186 = vmatprep.subr.bf16.mxu0 0
  %187 = vmatpush2.bf16.msra.mxu0 %v132
  %188 = vmatprep.mubr.bf16.mxu0 %v20
  %189 = vmatmul.mubr.bf16.gmra.mxu0 %v19
  %v190 = vpop.f32.mrf.mxu0
  %v191 = vadd.f32 %v58, %v190
  %v192 = vpop.f32.mrf.mxu0
  %v193 = vpop.f32.mrf.mxu0
  %v194 = vadd.f32 %v58, %v193
  %v195 = vpop.f32.mrf.mxu0
  %196 = vdwg.mxu0
  %197 = vst [vmem:[%s3] sm:$0xff] %v191
  %198 = vst [vmem:[%s3 + $0x8] sm:$0xff] %v194
  // Predicated region
  $region14: #{box_output_forward.1} parent=0 // pred_check
    _
  $region15: #{box_output_forward.1} parent=0 // pred_check_branch
    %200 = sbr.rel (0) target = $region17
  $region16: #{box_output_forward.1} parent=0 // pred_region
    _
  $region17: #{box_output_forward.1} parent=0 // pred_fallthru
    _
  // Predicated region
  $region18: #{box_output_forward.1} parent=0 // pred_check
    _
  $region19: #{box_output_forward.1} parent=0 // pred_check_branch
    %202 = sbr.rel (0) target = $region21
  $region20: #{box_output_forward.1} parent=0 // pred_region
    _
  $region21: #{box_output_forward.1} parent=0 // pred_fallthru
    _

</llo_original>
